<compile_context>
chip_gen: v7x
topology: tpu7x:2x2x1
jax: 0.10.0
libtpu: 0.0.40
codegen_flags: <defaults>
</compile_context>

<pallas_src>
import functools

import jax
import jax.numpy as jnp
from jax.experimental import pallas as pl
from jax.experimental.pallas import tpu as pltpu


def _round_up(x, m):
    return (x + m - 1) // m * m


# ----------------------------- Pallas kernel ------------------------------- #

def _conv_kernel(x_ref, w_ref, o_ref, *, k, wp, l_out):
    """Fused direct conv for one batch element.

    x_ref: (1, C_in, L_in)      bf16  — zero-padded image, spatial dims
                                        flattened row-major (width = wp), with
                                        extra zero tail so every tap's shifted
                                        window is in bounds.
    w_ref: (k*k, C_out, C_in)   bf16  — weights, tap-major.
    o_ref: (1, C_out, L_out)    f32   — flat stride-1 conv output (lane-dense).
    """
    x = x_ref[0]                                  # (C_in, L_in)
    c_in = x.shape[0]
    c_out = o_ref.shape[1]

    acc = jnp.zeros((c_out, l_out), dtype=jnp.float32)
    for kh in range(k):
        for kw in range(k):
            off = kh * wp + kw                    # static lane shift for this tap
            x_s = jax.lax.slice(x, (0, off), (c_in, off + l_out))  # (C_in, L_out)
            w_s = w_ref[kh * k + kw]                               # (C_out, C_in)
            acc = acc + jnp.dot(w_s, x_s, preferred_element_type=jnp.float32)

    o_ref[0] = acc.astype(o_ref.dtype)


# --------------------------- MyConv2d forward ------------------------------ #

@functools.partial(jax.jit, static_argnames=("kernel_size", "stride", "padding"))
def my_conv2d(x, weights, *, kernel_size, stride, padding):
    """x: (B, C_in, H, W) NCHW f32; weights: (C_out, C_in, k, k). Returns NCHW f32."""
    b, c_in, h_in, w_in = x.shape
    c_out = weights.shape[0]
    k, s, p = kernel_size, stride, padding

    hp, wp = h_in + 2 * p, w_in + 2 * p
    ho1, wo1 = hp - k + 1, wp - k + 1             # stride-1 output extents
    h_out = (h_in + 2 * p - k) // s + 1
    w_out = (w_in + 2 * p - k) // s + 1

    # Lane-dense flat output length (covers ho1 full rows of width wp, so the
    # flat->2D unflatten after the kernel is a cheap crop, not a transpose).
    l_out = _round_up(ho1 * wp, 128)
    # Flat input length: the largest tap shift is (k-1)*(wp+1).
    l_in = _round_up(l_out + (k - 1) * (wp + 1), 128)

    # Spatial zero-pad, flatten spatial dims, zero-tail, cast to bf16 (native
    # MXU rate; halves the HBM/VMEM byte stream for the activations).
    xp = jnp.pad(x, ((0, 0), (0, 0), (p, p), (p, p)))
    xf = xp.reshape(b, c_in, hp * wp)
    xf = jnp.pad(xf, ((0, 0), (0, 0), (0, l_in - hp * wp))).astype(jnp.bfloat16)

    # (C_out, C_in, k, k) -> (k*k, C_out, C_in) so each tap is a clean 2D slab.
    w_r = jnp.transpose(weights, (2, 3, 0, 1)).reshape(k * k, c_out, c_in)
    w_r = w_r.astype(jnp.bfloat16)

    kernel = functools.partial(_conv_kernel, k=k, wp=wp, l_out=l_out)

    # VMEM budget: double-buffered input/output blocks + weight block + slack.
    block_bytes = (2 * c_in * l_in * 2            # bf16 input blocks (x2 buf)
                   + 2 * c_out * l_out * 4        # f32 output blocks (x2 buf)
                   + k * k * c_out * c_in * 2)    # weights
    vmem_limit = min(64 * 1024 * 1024,
                     max(4 * block_bytes + (1 << 20), 16 * 1024 * 1024))

    out_flat = pl.pallas_call(
        kernel,
        out_shape=jax.ShapeDtypeStruct((b, c_out, l_out), jnp.float32),
        grid_spec=pltpu.PrefetchScalarGridSpec(
            num_scalar_prefetch=0,
            grid=(b,),
            in_specs=[
                pl.BlockSpec((1, c_in, l_in), lambda i: (i, 0, 0)),
                pl.BlockSpec((k * k, c_out, c_in), lambda i: (0, 0, 0)),
            ],
            out_specs=pl.BlockSpec((1, c_out, l_out), lambda i: (i, 0, 0)),
        ),
        compiler_params=pltpu.CompilerParams(
            dimension_semantics=("parallel",),
            vmem_limit_bytes=vmem_limit,
        ),
    )(xf, w_r)

    # Un-flatten: crop to ho1 full rows of width wp, drop the k-1 garbage
    # columns per row, then subsample for stride.  No transpose needed — the
    # kernel output is already channel-major (NCHW order).
    y = out_flat[:, :, : ho1 * wp].reshape(b, c_out, ho1, wp)[:, :, :, :wo1]
    # TODO(synk): for stride > 1 this computes the stride-1 output and
    # subsamples (s^2 extra MXU work); an in-kernel strided gather would avoid it.
    out = y[:, :, ::s, ::s]
    return out


# --------------------------------- main ------------------------------------ #

if __name__ == "__main__":
    key = jax.random.PRNGKey(0)
    k_w, k_x = jax.random.split(key)

    batch, c_in, c_out = 2, 4, 8
    h = w = 16
    kernel_size, stride, padding = 3, 1, 1

    # Deterministic parameter init mirroring nn.Parameter(randn(...) * 0.01)
    weights = jax.random.normal(
        k_w, (c_out, c_in, kernel_size, kernel_size), dtype=jnp.float32
    ) * 0.01
    x = jax.random.normal(k_x, (batch, c_in, h, w), dtype=jnp.float32)

    out = my_conv2d(x, weights, kernel_size=kernel_size, stride=stride,
                    padding=padding)
    out = jax.block_until_ready(out)

    h_out = (h + 2 * padding - kernel_size) // stride + 1
    w_out = (w + 2 * padding - kernel_size) // stride + 1
    assert out.shape == (batch, c_out, h_out, w_out)

    # Reference 1: exact check against an f32 conv on the same bf16-rounded
    # operands the kernel feeds the MXU (both accumulate in f32).
    x_b = x.astype(jnp.bfloat16).astype(jnp.float32)
    w_b = weights.astype(jnp.bfloat16).astype(jnp.float32)
    ref_bf16_ops = jax.lax.conv_general_dilated(
        x_b, w_b, window_strides=(stride, stride),
        padding=((padding, padding), (padding, padding)),
        dimension_numbers=("NCHW", "OIHW", "NCHW"),
        precision=jax.lax.Precision.HIGHEST,
    )
    assert jnp.allclose(out, ref_bf16_ops, atol=1e-4, rtol=1e-4)

    # Reference 2: full-f32 conv (module semantics); tolerance loosened for the
    # bf16 operand rounding (recommended MXU path).
    ref_f32 = jax.lax.conv_general_dilated(
        x, weights, window_strides=(stride, stride),
        padding=((padding, padding), (padding, padding)),
        dimension_numbers=("NCHW", "OIHW", "NCHW"),
        precision=jax.lax.Precision.HIGHEST,
    )
    assert jnp.allclose(out, ref_f32, atol=5e-3, rtol=5e-2)

    print("KERNEL_OK")
</pallas_src>

<mosaic_0001>
module attributes {stable_mosaic.version = 11 : i64} {
  func.func @_conv_kernel(%arg0: i32, %arg1: memref<1x4x512xbf16, #tpu.memory_space<vmem>>, %arg2: memref<9x8x4xbf16, #tpu.memory_space<vmem>>, %arg3: memref<1x8x384xf32, #tpu.memory_space<vmem>>) attributes {dimension_semantics = [#tpu.dimension_semantics<parallel>], iteration_bounds = array<i64: 2>, scalar_prefetch = 0 : i64, scratch_operands = 0 : i64, tpu.core_type = #tpu.core_type<tc>, window_params = [{transform_indices = @transform_0, window_bounds = array<i64: 1, 4, 512>}, {pipeline_mode = #tpu.pipeline_mode<synchronous>, transform_indices = @transform_1, window_bounds = array<i64: 9, 8, 4>}, {transform_indices = @transform_2, window_bounds = array<i64: 1, 8, 384>}]} {
    %c0 = arith.constant 0 : index
    %c0_0 = arith.constant 0 : index
    %c0_1 = arith.constant 0 : index
    %0 = vector.load %arg1[%c0, %c0_0, %c0_1] : memref<1x4x512xbf16, #tpu.memory_space<vmem>>, vector<1x4x512xbf16>
    %1 = vector.shape_cast %0 : vector<1x4x512xbf16> to vector<4x512xbf16>
    %cst = arith.constant 0.000000e+00 : f32
    %2 = vector.broadcast %cst : f32 to vector<8x384xf32>
    %3 = vector.extract_strided_slice %1 {offsets = [0, 0], sizes = [4, 384], strides = [1, 1]} : vector<4x512xbf16> to vector<4x384xbf16>
    %c0_2 = arith.constant 0 : index
    %c0_3 = arith.constant 0 : index
    %c0_4 = arith.constant 0 : index
    %4 = vector.load %arg2[%c0_2, %c0_3, %c0_4] : memref<9x8x4xbf16, #tpu.memory_space<vmem>>, vector<1x8x4xbf16>
    %5 = vector.shape_cast %4 : vector<1x8x4xbf16> to vector<8x4xbf16>
    %cst_5 = arith.constant dense<0.000000e+00> : vector<8x384xf32>
    %6 = tpu.matmul %5, %3, %cst_5 {dimension_numbers = #tpu.dot_dimension_numbers<[1], [0], [0], [1], [0, 0, 1, 1], [], []>} : vector<8x4xbf16>, vector<4x384xbf16>, vector<8x384xf32> -> vector<8x384xf32>
    %7 = arith.addf %2, %6 : vector<8x384xf32>
    %8 = vector.extract_strided_slice %1 {offsets = [0, 1], sizes = [4, 384], strides = [1, 1]} : vector<4x512xbf16> to vector<4x384xbf16>
    %c1 = arith.constant 1 : index
    %c0_6 = arith.constant 0 : index
    %c0_7 = arith.constant 0 : index
    %9 = vector.load %arg2[%c1, %c0_6, %c0_7] : memref<9x8x4xbf16, #tpu.memory_space<vmem>>, vector<1x8x4xbf16>
    %10 = vector.shape_cast %9 : vector<1x8x4xbf16> to vector<8x4xbf16>
    %cst_8 = arith.constant dense<0.000000e+00> : vector<8x384xf32>
    %11 = tpu.matmul %10, %8, %cst_8 {dimension_numbers = #tpu.dot_dimension_numbers<[1], [0], [0], [1], [0, 0, 1, 1], [], []>} : vector<8x4xbf16>, vector<4x384xbf16>, vector<8x384xf32> -> vector<8x384xf32>
    %12 = arith.addf %7, %11 : vector<8x384xf32>
    %13 = vector.extract_strided_slice %1 {offsets = [0, 2], sizes = [4, 384], strides = [1, 1]} : vector<4x512xbf16> to vector<4x384xbf16>
    %c2 = arith.constant 2 : index
    %c0_9 = arith.constant 0 : index
    %c0_10 = arith.constant 0 : index
    %14 = vector.load %arg2[%c2, %c0_9, %c0_10] : memref<9x8x4xbf16, #tpu.memory_space<vmem>>, vector<1x8x4xbf16>
    %15 = vector.shape_cast %14 : vector<1x8x4xbf16> to vector<8x4xbf16>
    %cst_11 = arith.constant dense<0.000000e+00> : vector<8x384xf32>
    %16 = tpu.matmul %15, %13, %cst_11 {dimension_numbers = #tpu.dot_dimension_numbers<[1], [0], [0], [1], [0, 0, 1, 1], [], []>} : vector<8x4xbf16>, vector<4x384xbf16>, vector<8x384xf32> -> vector<8x384xf32>
    %17 = arith.addf %12, %16 : vector<8x384xf32>
    %18 = vector.extract_strided_slice %1 {offsets = [0, 18], sizes = [4, 384], strides = [1, 1]} : vector<4x512xbf16> to vector<4x384xbf16>
    %c3 = arith.constant 3 : index
    %c0_12 = arith.constant 0 : index
    %c0_13 = arith.constant 0 : index
    %19 = vector.load %arg2[%c3, %c0_12, %c0_13] : memref<9x8x4xbf16, #tpu.memory_space<vmem>>, vector<1x8x4xbf16>
    %20 = vector.shape_cast %19 : vector<1x8x4xbf16> to vector<8x4xbf16>
    %cst_14 = arith.constant dense<0.000000e+00> : vector<8x384xf32>
    %21 = tpu.matmul %20, %18, %cst_14 {dimension_numbers = #tpu.dot_dimension_numbers<[1], [0], [0], [1], [0, 0, 1, 1], [], []>} : vector<8x4xbf16>, vector<4x384xbf16>, vector<8x384xf32> -> vector<8x384xf32>
    %22 = arith.addf %17, %21 : vector<8x384xf32>
    %23 = vector.extract_strided_slice %1 {offsets = [0, 19], sizes = [4, 384], strides = [1, 1]} : vector<4x512xbf16> to vector<4x384xbf16>
    %c4 = arith.constant 4 : index
    %c0_15 = arith.constant 0 : index
    %c0_16 = arith.constant 0 : index
    %24 = vector.load %arg2[%c4, %c0_15, %c0_16] : memref<9x8x4xbf16, #tpu.memory_space<vmem>>, vector<1x8x4xbf16>
    %25 = vector.shape_cast %24 : vector<1x8x4xbf16> to vector<8x4xbf16>
    %cst_17 = arith.constant dense<0.000000e+00> : vector<8x384xf32>
    %26 = tpu.matmul %25, %23, %cst_17 {dimension_numbers = #tpu.dot_dimension_numbers<[1], [0], [0], [1], [0, 0, 1, 1], [], []>} : vector<8x4xbf16>, vector<4x384xbf16>, vector<8x384xf32> -> vector<8x384xf32>
    %27 = arith.addf %22, %26 : vector<8x384xf32>
    %28 = vector.extract_strided_slice %1 {offsets = [0, 20], sizes = [4, 384], strides = [1, 1]} : vector<4x512xbf16> to vector<4x384xbf16>
    %c5 = arith.constant 5 : index
    %c0_18 = arith.constant 0 : index
    %c0_19 = arith.constant 0 : index
    %29 = vector.load %arg2[%c5, %c0_18, %c0_19] : memref<9x8x4xbf16, #tpu.memory_space<vmem>>, vector<1x8x4xbf16>
    %30 = vector.shape_cast %29 : vector<1x8x4xbf16> to vector<8x4xbf16>
    %cst_20 = arith.constant dense<0.000000e+00> : vector<8x384xf32>
    %31 = tpu.matmul %30, %28, %cst_20 {dimension_numbers = #tpu.dot_dimension_numbers<[1], [0], [0], [1], [0, 0, 1, 1], [], []>} : vector<8x4xbf16>, vector<4x384xbf16>, vector<8x384xf32> -> vector<8x384xf32>
    %32 = arith.addf %27, %31 : vector<8x384xf32>
    %33 = vector.extract_strided_slice %1 {offsets = [0, 36], sizes = [4, 384], strides = [1, 1]} : vector<4x512xbf16> to vector<4x384xbf16>
    %c6 = arith.constant 6 : index
    %c0_21 = arith.constant 0 : index
    %c0_22 = arith.constant 0 : index
    %34 = vector.load %arg2[%c6, %c0_21, %c0_22] : memref<9x8x4xbf16, #tpu.memory_space<vmem>>, vector<1x8x4xbf16>
    %35 = vector.shape_cast %34 : vector<1x8x4xbf16> to vector<8x4xbf16>
    %cst_23 = arith.constant dense<0.000000e+00> : vector<8x384xf32>
    %36 = tpu.matmul %35, %33, %cst_23 {dimension_numbers = #tpu.dot_dimension_numbers<[1], [0], [0], [1], [0, 0, 1, 1], [], []>} : vector<8x4xbf16>, vector<4x384xbf16>, vector<8x384xf32> -> vector<8x384xf32>
    %37 = arith.addf %32, %36 : vector<8x384xf32>
    %38 = vector.extract_strided_slice %1 {offsets = [0, 37], sizes = [4, 384], strides = [1, 1]} : vector<4x512xbf16> to vector<4x384xbf16>
    %c7 = arith.constant 7 : index
    %c0_24 = arith.constant 0 : index
    %c0_25 = arith.constant 0 : index
    %39 = vector.load %arg2[%c7, %c0_24, %c0_25] : memref<9x8x4xbf16, #tpu.memory_space<vmem>>, vector<1x8x4xbf16>
    %40 = vector.shape_cast %39 : vector<1x8x4xbf16> to vector<8x4xbf16>
    %cst_26 = arith.constant dense<0.000000e+00> : vector<8x384xf32>
    %41 = tpu.matmul %40, %38, %cst_26 {dimension_numbers = #tpu.dot_dimension_numbers<[1], [0], [0], [1], [0, 0, 1, 1], [], []>} : vector<8x4xbf16>, vector<4x384xbf16>, vector<8x384xf32> -> vector<8x384xf32>
    %42 = arith.addf %37, %41 : vector<8x384xf32>
    %43 = vector.extract_strided_slice %1 {offsets = [0, 38], sizes = [4, 384], strides = [1, 1]} : vector<4x512xbf16> to vector<4x384xbf16>
    %c8 = arith.constant 8 : index
    %c0_27 = arith.constant 0 : index
    %c0_28 = arith.constant 0 : index
    %44 = vector.load %arg2[%c8, %c0_27, %c0_28] : memref<9x8x4xbf16, #tpu.memory_space<vmem>>, vector<1x8x4xbf16>
    %45 = vector.shape_cast %44 : vector<1x8x4xbf16> to vector<8x4xbf16>
    %cst_29 = arith.constant dense<0.000000e+00> : vector<8x384xf32>
    %46 = tpu.matmul %45, %43, %cst_29 {dimension_numbers = #tpu.dot_dimension_numbers<[1], [0], [0], [1], [0, 0, 1, 1], [], []>} : vector<8x4xbf16>, vector<4x384xbf16>, vector<8x384xf32> -> vector<8x384xf32>
    %47 = arith.addf %42, %46 : vector<8x384xf32>
    %c0_30 = arith.constant 0 : index
    %c0_31 = arith.constant 0 : index
    %c0_32 = arith.constant 0 : index
    %48 = vector.load %arg3[%c0_30, %c0_31, %c0_32] : memref<1x8x384xf32, #tpu.memory_space<vmem>>, vector<1x8x384xf32>
    %49 = vector.shape_cast %48 : vector<1x8x384xf32> to vector<8x384xf32>
    %50 = vector.shape_cast %47 : vector<8x384xf32> to vector<1x8x384xf32>
    tpu.vector_store %arg3[%c0_30, %c0_31, %c0_32], %50 {strides = array<i32>} : memref<1x8x384xf32, #tpu.memory_space<vmem>>, vector<1x8x384xf32>,
    return
  }
  func.func @transform_0(%arg0: i32) -> (i32, i32, i32) {
    %c0_i32 = arith.constant 0 : i32
    %c0_i32_0 = arith.constant 0 : i32
    %c0_i32_1 = arith.constant 0 : i32
    return %arg0, %c0_i32, %c0_i32_0 : i32, i32, i32
  }
  func.func @transform_1(%arg0: i32) -> (i32, i32, i32) {
    %c0_i32 = arith.constant 0 : i32
    %c0_i32_0 = arith.constant 0 : i32
    %c0_i32_1 = arith.constant 0 : i32
    %c0_i32_2 = arith.constant 0 : i32
    return %c0_i32, %c0_i32_0, %c0_i32_1 : i32, i32, i32
  }
  func.func @transform_2(%arg0: i32) -> (i32, i32, i32) {
    %c0_i32 = arith.constant 0 : i32
    %c0_i32_0 = arith.constant 0 : i32
    %c0_i32_1 = arith.constant 0 : i32
    return %arg0, %c0_i32, %c0_i32_0 : i32, i32, i32
  }
}

</mosaic_0001>

<llo_original>
// kernel: my_conv2d.1
$region0: #{my_conv2d.1}
  #allocation0 [shape = 'u32[]', space=smem, size = 0x4, offset = 0x4, fixed_abs, tag = 'smem constant byte address 0x4 - core index']
  #allocation1 [shape = 'u32[144,128]{1,0:T(1,128)}', space=vmem, size = 0x12000, scoped, tag = 'internal scratch']
  %s0 = inlined_call_operand.vmem [shape: bf16[2,4,512], index: 0, kind: input, shape index: {}]
  %s1 = inlined_call_operand.vmem [shape: bf16[9,8,4], index: 1, kind: input, shape index: {}]
  %s2 = inlined_call_operand.vmem [shape: f32[2,8,384], index: 2, kind: output, shape index: {}]
  %s3 = sld [smem:[#allocation0]]
  $region41: #{my_conv2d.1} parent=0
    _
  %s5 = ssub.s32 1, %s3
  %s6 = scalar_select 0, %s5, %s3
  loop: start=0, step=1, limit=4
  $region2: #{my_conv2d.1} parent=0 // loop_pre_header
    _
  $region3: #{my_conv2d.1} parent=0 // loop_header
    %s8 = sphi 0, %s12
    %p9 = scmp.ge.s32.totalorder %s8, 4
    %s18 = sphi 0, %s20
    %s21 = sphi 0, %s18
    %s22 = sphi 0, %s21
    %s38 = sphi 0, %s22
    %s42 = sphi 0, %s42
    %s44 = sphi 0, %s42
    %s45 = sphi 0, %s44
    %s59 = sphi 0, %s45
    %s65 = sphi 0, %s67
    %s68 = sphi 0, %s65
    %s69 = sphi 0, %s68
    %s85 = sphi 0, %s69
  $region4: #{my_conv2d.1} parent=0 // loop_header_branch
    %11 = sbr.rel (%p9) target = $region8
  $region5: #{my_conv2d.1} parent=0 // loop_body
    %s13 = ssub.s32 %s8, 1
    %s14 = ssub.s32 %s8, 2
    %s15 = sadd.s32 %s8, 1
    %s16 = ssub.s32 %s8, %s15
    %p17 = scmp.eq.s32.totalorder %s16, 0
    %s19 = sadd.s32 %s18, 1
    %s20 = scalar_select %p17, %s18, %s19
    %p23 = pneg %p17
    %p24 = scmp.eq.s32.totalorder %s8, 1
    %p25 = por %p23, %p24
    %p26 = scmp.ne.s32.totalorder %s18, %s21
    %p27 = scmp.eq.s32.totalorder %s8, 0
    %p28 = por %p26, %p27
    %p29 = scmp.ne.s32.totalorder %s18, %s21
    %p30 = scmp.eq.s32.totalorder %s13, 1
    %p31 = por %p29, %p30
    %p32 = scmp.ne.s32.totalorder %s21, %s22
    %p33 = scmp.eq.s32.totalorder %s13, 0
    %p34 = por %p32, %p33
    %p35 = scmp.ne.s32.totalorder %s21, %s22
    %p36 = scmp.eq.s32.totalorder %s14, 1
    %p37 = por %p35, %p36
    %p39 = scmp.ne.s32.totalorder %s22, %s38
    %p40 = scmp.eq.s32.totalorder %s14, 0
    %p41 = por %p39, %p40
    %s43 = sadd.s32 %s42, 1
    %p46 = scmp.eq.s32.totalorder %s8, 1
    %p47 = scmp.ne.s32.totalorder %s42, %s44
    %p48 = scmp.eq.s32.totalorder %s8, 0
    %p49 = por %p47, %p48
    %p50 = scmp.ne.s32.totalorder %s42, %s44
    %p51 = scmp.eq.s32.totalorder %s13, 1
    %p52 = por %p50, %p51
    %p53 = scmp.ne.s32.totalorder %s44, %s45
    %p54 = scmp.eq.s32.totalorder %s13, 0
    %p55 = por %p53, %p54
    %p56 = scmp.ne.s32.totalorder %s44, %s45
    %p57 = scmp.eq.s32.totalorder %s14, 1
    %p58 = por %p56, %p57
    %p60 = scmp.ne.s32.totalorder %s45, %s59
    %p61 = scmp.eq.s32.totalorder %s14, 0
    %p62 = por %p60, %p61
    %s63 = ssub.s32 %s8, %s15
    %p64 = scmp.eq.s32.totalorder %s63, 0
    %s66 = sadd.s32 %s65, 1
    %s67 = scalar_select %p64, %s65, %s66
    %p70 = pneg %p64
    %p71 = scmp.eq.s32.totalorder %s8, 1
    %p72 = por %p70, %p71
    %p73 = scmp.ne.s32.totalorder %s65, %s68
    %p74 = scmp.eq.s32.totalorder %s8, 0
    %p75 = por %p73, %p74
    %p76 = scmp.ne.s32.totalorder %s65, %s68
    %p77 = scmp.eq.s32.totalorder %s13, 1
    %p78 = por %p76, %p77
    %p79 = scmp.ne.s32.totalorder %s68, %s69
    %p80 = scmp.eq.s32.totalorder %s13, 0
    %p81 = por %p79, %p80
    %p82 = scmp.ne.s32.totalorder %s68, %s69
    %p83 = scmp.eq.s32.totalorder %s14, 1
    %p84 = por %p82, %p83
    %p86 = scmp.ne.s32.totalorder %s69, %s85
    %p87 = scmp.eq.s32.totalorder %s14, 0
    %p88 = por %p86, %p87
    %p89 = scmp.le.s32.totalorder 1, %s8
    %p90 = scmp.lt.s32.totalorder %s8, 3
    %p91 = pnand %p89, %p90
    %p92 = pneg %p91
    // Predicated region
    $region9: #{my_conv2d.1} parent=5 // pred_check
      _
    $region10: #{my_conv2d.1} parent=5 // pred_check_branch
      %94 = sbr.rel (%p91) target = $region12
    $region11: #{my_conv2d.1} parent=5 // pred_region
      %s95 = ssub.s32 %s8, 1
      // Predicated region
      $region13: #{my_conv2d.1} parent=11 // pred_check
        %p96 = pneg %p55
      $region14: #{my_conv2d.1} parent=11 // pred_check_branch
        %98 = sbr.rel (%p96) target = $region16
      $region15: #{my_conv2d.1} parent=11 // pred_region
        _
      $region16: #{my_conv2d.1} parent=11 // pred_fallthru
        _
    $region12: #{my_conv2d.1} parent=5 // pred_fallthru
      _
    %p99 = scmp.lt.s32.totalorder %s8, 2
    // Predicated region
    $region17: #{my_conv2d.1} parent=5 // pred_check
      %p100 = pneg %p99
    $region18: #{my_conv2d.1} parent=5 // pred_check_branch
      %102 = sbr.rel (%p100) target = $region20
    $region19: #{my_conv2d.1} parent=5 // pred_region
      // Predicated region
      $region21: #{my_conv2d.1} parent=19 // pred_check
        %p103 = pneg %p28
      $region22: #{my_conv2d.1} parent=19 // pred_check_branch
        %105 = sbr.rel (%p103) target = $region24
      $region23: #{my_conv2d.1} parent=19 // pred_region
        %p106 = scmp.lt.s32.totalorder %s8, 1
        %s107 = scalar_select %p106, %s8, 1
        %s108 = smul.addr %s107, 4
        %s109 = smul.addr %s108, 2
        %s110 = scalar_lea.vmem %s0, %s109
      $region24: #{my_conv2d.1} parent=19 // pred_fallthru
        _
    $region20: #{my_conv2d.1} parent=5 // pred_fallthru
      _
    %p111 = scmp.le.s32.totalorder 1, %s8
    %p112 = scmp.lt.s32.totalorder %s8, 3
    %p113 = pnand %p111, %p112
    %p114 = pneg %p113
    // Predicated region
    $region25: #{my_conv2d.1} parent=5 // pred_check
      _
    $region26: #{my_conv2d.1} parent=5 // pred_check_branch
      %116 = sbr.rel (%p113) target = $region28
    $region27: #{my_conv2d.1} parent=5 // pred_region
      %s117 = ssub.s32 %s8, 1
      %p118 = scmp.lt.s32.totalorder %s13, 1
      %s119 = scalar_select %p118, %s13, 1
      %s120 = smul.addr %s119, 4
      %s121 = smul.addr %s120, 2
      %s122 = scalar_lea.vmem %s0, %s121
      %p123 = pneg %p34
      %p124 = pneg %p31
      %p125 = pneg %p55
      %p126 = pneg %p52
      %p127 = pneg %p81
      %p128 = pneg %p78
      %p129 = scmp.lt.s32.totalorder %s13, 1
      %s130 = scalar_select %p129, %s13, 1
      %s131 = smul.addr %s130, 3
      %s132 = smul.addr %s131, 8
      %s133 = scalar_lea.vmem %s2, %s132
      %p134 = scmp.lt.s32.totalorder %s13, 1
      %s135 = scalar_select %p134, %s13, 1
      %s136 = smul.addr %s135, 4
      %s137 = smul.addr %s136, 2
      %s138 = scalar_lea.vmem %s0, %s137
      %p139 = scmp.lt.s32.totalorder %s13, 1
      %s140 = scalar_select %p139, %s13, 1
      %s141 = smul.addr %s140, 3
      %s142 = smul.addr %s141, 8
      %s143 = scalar_lea.vmem %s2, %s142
      %v145 = vld [vmem:[%s138] sm:$0xff]
      %v146 = vld [vmem:[%s1] sm:$0xf]
      %s147 = scalar_lea.vmem %s1, 4
      %v148 = vld [vmem:[%s147] sm:$0xf]
      %v150 = vcombine.high %v145, %v145
      %v152 = vunpack.c.l.s4 1983009808
      %v153 = vunpack.c.0.s8 %v152
      %v154 = vlaneseq
      %v155 = vshrl.u32 %v154, 7
      %v156 = vsub.s32 %v153, %v155
      %v157 = vrot.slane %v145, %v156
      %v159 = vunpack.c.l.s4 1983009808
      %v160 = vunpack.c.0.s8 %v159
      %v161 = vlaneseq
      %v162 = vshrl.u32 %v161, 7
      %v163 = vsub.s32 %v160, %v162
      %v164 = vrot.slane %v150, %v163
      %v165 = vcombine.high %v157, %v157
      %v166 = vcombine.high %v164, %v164
      %167 = vrot.lane.b32.xlu0 %v157, 127
      %v168 = vpop.permute.xlu0 %167
      %169 = vrot.lane.b32.xlu0 %v165, 127
      %v170 = vpop.permute.xlu0 %169
      %171 = vrot.lane.b32.xlu0 %v164, 127
      %v172 = vpop.permute.xlu0 %171
      %173 = vrot.lane.b32.xlu0 %v166, 127
      %v174 = vpop.permute.xlu0 %173
      %vm175 = vcmask 1039360
      %v176 = vsel %vm175, %v168, %v170
      %v177 = vsel %vm175, %v170, %v172
      %v178 = vsel %vm175, %v172, %v174
      %vm179 = vcmask 31744
      %v181 = vsel %vm179, %v148, 0
      %vm183 = vcmask 1041408
      %v185 = vsel %vm183, %v176, 0
      %v188 = vsel %vm183, %v177, 0
      %v191 = vsel %vm183, %v178, 0
      %193 = vmatprep.subr.bf16.mxu0 %v188
      %194 = vmatpush1.bf16.msra.mxu0 %v185
      %195 = vmatprep.subr.bf16.mxu0 0
      %196 = vmatpush1.bf16.msra.mxu0 0
      %197 = vmatprep.subr.bf16.mxu0 0
      %198 = vmatpush1.bf16.msra.mxu0 0
      %199 = vmatprep.subr.bf16.mxu0 0
      %200 = vmatpush1.bf16.msra.mxu0 0
      %201 = vmatprep.subr.bf16.mxu0 0
      %202 = vmatpush1.bf16.msra.mxu0 0
      %203 = vmatprep.subr.bf16.mxu0 0
      %204 = vmatpush1.bf16.msra.mxu0 0
      %205 = vmatprep.subr.bf16.mxu0 0
      %206 = vmatpush1.bf16.msra.mxu0 0
      %207 = vmatprep.subr.bf16.mxu0 0
      %208 = vmatpush1.bf16.msra.mxu0 0
      %209 = vmatprep.subr.bf16.mxu0 0
      %210 = vmatpush1.bf16.msra.mxu0 0
      %211 = vmatprep.subr.bf16.mxu0 0
      %212 = vmatpush1.bf16.msra.mxu0 0
      %213 = vmatprep.subr.bf16.mxu0 0
      %214 = vmatpush1.bf16.msra.mxu0 0
      %215 = vmatprep.subr.bf16.mxu0 0
      %216 = vmatpush1.bf16.msra.mxu0 0
      %217 = vmatprep.subr.bf16.mxu0 0
      %218 = vmatpush1.bf16.msra.mxu0 0
      %219 = vmatprep.subr.bf16.mxu0 0
      %220 = vmatpush1.bf16.msra.mxu0 0
      %221 = vmatprep.subr.bf16.mxu0 0
      %222 = vmatpush1.bf16.msra.mxu0 0
      %223 = vmatprep.subr.bf16.mxu0 0
      %224 = vmatpush1.bf16.msra.mxu0 0
      %225 = vmatprep.mubr.bf16.mxu0 0
      %226 = vmatmul.mubr.bf16.gmra.mrb[0].mxu0 %v181
      %v227 = vpop.f32.mrb[0].mxu0
      %v228 = vadd.f32 0.0, %v227
      %v229 = vpop.f32.mrb[0].mxu0
      %v230 = vadd.f32 0.0, %v229
      %v231 = vpop.f32.mrb[0].mxu0
      %v232 = vpop.f32.mrb[0].mxu0
      %233 = vdwg.mxu0
      %234 = vmatprep.subr.bf16.mxu0 0
      %235 = vmatpush1.bf16.msra.mxu0 %v191
      %236 = vmatprep.subr.bf16.mxu0 0
      %237 = vmatpush1.bf16.msra.mxu0 0
      %238 = vmatprep.subr.bf16.mxu0 0
      %239 = vmatpush1.bf16.msra.mxu0 0
      %240 = vmatprep.subr.bf16.mxu0 0
      %241 = vmatpush1.bf16.msra.mxu0 0
      %242 = vmatprep.subr.bf16.mxu0 0
      %243 = vmatpush1.bf16.msra.mxu0 0
      %244 = vmatprep.subr.bf16.mxu0 0
      %245 = vmatpush1.bf16.msra.mxu0 0
      %246 = vmatprep.subr.bf16.mxu0 0
      %247 = vmatpush1.bf16.msra.mxu0 0
      %248 = vmatprep.subr.bf16.mxu0 0
      %249 = vmatpush1.bf16.msra.mxu0 0
      %250 = vmatprep.subr.bf16.mxu0 0
      %251 = vmatpush1.bf16.msra.mxu0 0
      %252 = vmatprep.subr.bf16.mxu0 0
      %253 = vmatpush1.bf16.msra.mxu0 0
      %254 = vmatprep.subr.bf16.mxu0 0
      %255 = vmatpush1.bf16.msra.mxu0 0
      %256 = vmatprep.subr.bf16.mxu0 0
      %257 = vmatpush1.bf16.msra.mxu0 0
      %258 = vmatprep.subr.bf16.mxu0 0
      %259 = vmatpush1.bf16.msra.mxu0 0
      %260 = vmatprep.subr.bf16.mxu0 0
      %261 = vmatpush1.bf16.msra.mxu0 0
      %262 = vmatprep.subr.bf16.mxu0 0
      %263 = vmatpush1.bf16.msra.mxu0 0
      %264 = vmatprep.subr.bf16.mxu0 0
      %265 = vmatpush1.bf16.msra.mxu0 0
      %266 = vmatprep.mubr.bf16.mxu0 0
      %267 = vmatmul.mubr.bf16.gmra.mrb[0].mxu0 %v181
      %v268 = vpop.f32.mrb[0].mxu0
      %v269 = vadd.f32 0.0, %v268
      %v270 = vpop.f32.mrb[0].mxu0
      %v271 = vpop.f32.mrb[0].mxu0
      %v272 = vpop.f32.mrb[0].mxu0
      %273 = vdwg.mxu0
      %v275 = vsel %vm179, %v146, 0
      %v278 = vsel %vm183, %v157, 0
      %v281 = vsel %vm183, %v165, 0
      %v284 = vsel %vm183, %v164, 0
      %286 = vmatprep.subr.bf16.mxu0 %v281
      %287 = vmatpush1.bf16.msra.mxu0 %v278
      %288 = vmatprep.subr.bf16.mxu0 0
      %289 = vmatpush1.bf16.msra.mxu0 0
      %290 = vmatprep.subr.bf16.mxu0 0
      %291 = vmatpush1.bf16.msra.mxu0 0
      %292 = vmatprep.subr.bf16.mxu0 0
      %293 = vmatpush1.bf16.msra.mxu0 0
      %294 = vmatprep.subr.bf16.mxu0 0
      %295 = vmatpush1.bf16.msra.mxu0 0
      %296 = vmatprep.subr.bf16.mxu0 0
      %297 = vmatpush1.bf16.msra.mxu0 0
      %298 = vmatprep.subr.bf16.mxu0 0
      %299 = vmatpush1.bf16.msra.mxu0 0
      %300 = vmatprep.subr.bf16.mxu0 0
      %301 = vmatpush1.bf16.msra.mxu0 0
      %302 = vmatprep.subr.bf16.mxu0 0
      %303 = vmatpush1.bf16.msra.mxu0 0
      %304 = vmatprep.subr.bf16.mxu0 0
      %305 = vmatpush1.bf16.msra.mxu0 0
      %306 = vmatprep.subr.bf16.mxu0 0
      %307 = vmatpush1.bf16.msra.mxu0 0
      %308 = vmatprep.subr.bf16.mxu0 0
      %309 = vmatpush1.bf16.msra.mxu0 0
      %310 = vmatprep.subr.bf16.mxu0 0
      %311 = vmatpush1.bf16.msra.mxu0 0
      %312 = vmatprep.subr.bf16.mxu0 0
      %313 = vmatpush1.bf16.msra.mxu0 0
      %314 = vmatprep.subr.bf16.mxu0 0
      %315 = vmatpush1.bf16.msra.mxu0 0
      %316 = vmatprep.subr.bf16.mxu0 0
      %317 = vmatpush1.bf16.msra.mxu0 0
      %318 = vmatprep.mubr.bf16.mxu0 0
      %319 = vmatmul.mubr.bf16.gmra.mrb[0].mxu0 %v275
      %v320 = vpop.f32.mrb[0].mxu0
      %v321 = vadd.f32 %v228, %v320
      %v322 = vpop.f32.mrb[0].mxu0
      %v323 = vadd.f32 %v230, %v322
      %v324 = vpop.f32.mrb[0].mxu0
      %v325 = vpop.f32.mrb[0].mxu0
      %326 = vdwg.mxu0
      %327 = vmatprep.subr.bf16.mxu0 0
      %328 = vmatpush1.bf16.msra.mxu0 %v284
      %329 = vmatprep.subr.bf16.mxu0 0
      %330 = vmatpush1.bf16.msra.mxu0 0
      %331 = vmatprep.subr.bf16.mxu0 0
      %332 = vmatpush1.bf16.msra.mxu0 0
      %333 = vmatprep.subr.bf16.mxu0 0
      %334 = vmatpush1.bf16.msra.mxu0 0
      %335 = vmatprep.subr.bf16.mxu0 0
      %336 = vmatpush1.bf16.msra.mxu0 0
      %337 = vmatprep.subr.bf16.mxu0 0
      %338 = vmatpush1.bf16.msra.mxu0 0
      %339 = vmatprep.subr.bf16.mxu0 0
      %340 = vmatpush1.bf16.msra.mxu0 0
      %341 = vmatprep.subr.bf16.mxu0 0
      %342 = vmatpush1.bf16.msra.mxu0 0
      %343 = vmatprep.subr.bf16.mxu0 0
      %344 = vmatpush1.bf16.msra.mxu0 0
      %345 = vmatprep.subr.bf16.mxu0 0
      %346 = vmatpush1.bf16.msra.mxu0 0
      %347 = vmatprep.subr.bf16.mxu0 0
      %348 = vmatpush1.bf16.msra.mxu0 0
      %349 = vmatprep.subr.bf16.mxu0 0
      %350 = vmatpush1.bf16.msra.mxu0 0
      %351 = vmatprep.subr.bf16.mxu0 0
      %352 = vmatpush1.bf16.msra.mxu0 0
      %353 = vmatprep.subr.bf16.mxu0 0
      %354 = vmatpush1.bf16.msra.mxu0 0
      %355 = vmatprep.subr.bf16.mxu0 0
      %356 = vmatpush1.bf16.msra.mxu0 0
      %357 = vmatprep.subr.bf16.mxu0 0
      %358 = vmatpush1.bf16.msra.mxu0 0
      %359 = vmatprep.mubr.bf16.mxu0 0
      %360 = vmatmul.mubr.bf16.gmra.mrb[0].mxu0 %v275
      %v361 = vpop.f32.mrb[0].mxu0
      %v362 = vadd.f32 %v269, %v361
      %v363 = vpop.f32.mrb[0].mxu0
      %v364 = vpop.f32.mrb[0].mxu0
      %v365 = vpop.f32.mrb[0].mxu0
      %366 = vdwg.mxu0
      %s367 = scalar_lea.vmem %s1, 8
      %v368 = vld [vmem:[%s367] sm:$0xf]
      %369 = vrot.lane.b32.xlu0 %v157, 126
      %v370 = vpop.permute.xlu0 %369
      %371 = vrot.lane.b32.xlu0 %v165, 126
      %v372 = vpop.permute.xlu0 %371
      %373 = vrot.lane.b32.xlu0 %v164, 126
      %v374 = vpop.permute.xlu0 %373
      %375 = vrot.lane.b32.xlu0 %v166, 126
      %v376 = vpop.permute.xlu0 %375
      %vm377 = vcmask 1031168
      %v378 = vsel %vm377, %v370, %v372
      %v379 = vsel %vm377, %v372, %v374
      %v380 = vsel %vm377, %v374, %v376
      %v382 = vsel %vm179, %v368, 0
      %v385 = vsel %vm183, %v378, 0
      %v388 = vsel %vm183, %v379, 0
      %v391 = vsel %vm183, %v380, 0
      %393 = vmatprep.subr.bf16.mxu0 %v388
      %394 = vmatpush1.bf16.msra.mxu0 %v385
      %395 = vmatprep.subr.bf16.mxu0 0
      %396 = vmatpush1.bf16.msra.mxu0 0
      %397 = vmatprep.subr.bf16.mxu0 0
      %398 = vmatpush1.bf16.msra.mxu0 0
      %399 = vmatprep.subr.bf16.mxu0 0
      %400 = vmatpush1.bf16.msra.mxu0 0
      %401 = vmatprep.subr.bf16.mxu0 0
      %402 = vmatpush1.bf16.msra.mxu0 0
      %403 = vmatprep.subr.bf16.mxu0 0
      %404 = vmatpush1.bf16.msra.mxu0 0
      %405 = vmatprep.subr.bf16.mxu0 0
      %406 = vmatpush1.bf16.msra.mxu0 0
      %407 = vmatprep.subr.bf16.mxu0 0
      %408 = vmatpush1.bf16.msra.mxu0 0
      %409 = vmatprep.subr.bf16.mxu0 0
      %410 = vmatpush1.bf16.msra.mxu0 0
      %411 = vmatprep.subr.bf16.mxu0 0
      %412 = vmatpush1.bf16.msra.mxu0 0
      %413 = vmatprep.subr.bf16.mxu0 0
      %414 = vmatpush1.bf16.msra.mxu0 0
      %415 = vmatprep.subr.bf16.mxu0 0
      %416 = vmatpush1.bf16.msra.mxu0 0
      %417 = vmatprep.subr.bf16.mxu0 0
      %418 = vmatpush1.bf16.msra.mxu0 0
      %419 = vmatprep.subr.bf16.mxu0 0
      %420 = vmatpush1.bf16.msra.mxu0 0
      %421 = vmatprep.subr.bf16.mxu0 0
      %422 = vmatpush1.bf16.msra.mxu0 0
      %423 = vmatprep.subr.bf16.mxu0 0
      %424 = vmatpush1.bf16.msra.mxu0 0
      %425 = vmatprep.mubr.bf16.mxu0 0
      %426 = vmatmul.mubr.bf16.gmra.mrb[0].mxu0 %v382
      %v427 = vpop.f32.mrb[0].mxu0
      %v428 = vadd.f32 0.0, %v427
      %v429 = vpop.f32.mrb[0].mxu0
      %v430 = vadd.f32 0.0, %v429
      %v431 = vpop.f32.mrb[0].mxu0
      %v432 = vpop.f32.mrb[0].mxu0
      %433 = vdwg.mxu0
      %434 = vmatprep.subr.bf16.mxu0 0
      %435 = vmatpush1.bf16.msra.mxu0 %v391
      %436 = vmatprep.subr.bf16.mxu0 0
      %437 = vmatpush1.bf16.msra.mxu0 0
      %438 = vmatprep.subr.bf16.mxu0 0
      %439 = vmatpush1.bf16.msra.mxu0 0
      %440 = vmatprep.subr.bf16.mxu0 0
      %441 = vmatpush1.bf16.msra.mxu0 0
      %442 = vmatprep.subr.bf16.mxu0 0
      %443 = vmatpush1.bf16.msra.mxu0 0
      %444 = vmatprep.subr.bf16.mxu0 0
      %445 = vmatpush1.bf16.msra.mxu0 0
      %446 = vmatprep.subr.bf16.mxu0 0
      %447 = vmatpush1.bf16.msra.mxu0 0
      %448 = vmatprep.subr.bf16.mxu0 0
      %449 = vmatpush1.bf16.msra.mxu0 0
      %450 = vmatprep.subr.bf16.mxu0 0
      %451 = vmatpush1.bf16.msra.mxu0 0
      %452 = vmatprep.subr.bf16.mxu0 0
      %453 = vmatpush1.bf16.msra.mxu0 0
      %454 = vmatprep.subr.bf16.mxu0 0
      %455 = vmatpush1.bf16.msra.mxu0 0
      %456 = vmatprep.subr.bf16.mxu0 0
      %457 = vmatpush1.bf16.msra.mxu0 0
      %458 = vmatprep.subr.bf16.mxu0 0
      %459 = vmatpush1.bf16.msra.mxu0 0
      %460 = vmatprep.subr.bf16.mxu0 0
      %461 = vmatpush1.bf16.msra.mxu0 0
      %462 = vmatprep.subr.bf16.mxu0 0
      %463 = vmatpush1.bf16.msra.mxu0 0
      %464 = vmatprep.subr.bf16.mxu0 0
      %465 = vmatpush1.bf16.msra.mxu0 0
      %466 = vmatprep.mubr.bf16.mxu0 0
      %467 = vmatmul.mubr.bf16.gmra.mrb[0].mxu0 %v382
      %v468 = vpop.f32.mrb[0].mxu0
      %v469 = vadd.f32 0.0, %v468
      %v470 = vpop.f32.mrb[0].mxu0
      %v471 = vpop.f32.mrb[0].mxu0
      %v472 = vpop.f32.mrb[0].mxu0
      %473 = vdwg.mxu0
      %v474 = vadd.f32 %v321, %v428
      %v475 = vadd.f32 %v323, %v430
      %v476 = vadd.f32 %v362, %v469
      %s477 = scalar_lea.vmem %s1, 12
      %v478 = vld [vmem:[%s477] sm:$0xf]
      %479 = vrot.lane.b32.xlu0 %v157, 110
      %v480 = vpop.permute.xlu0 %479
      %481 = vrot.lane.b32.xlu0 %v165, 110
      %v482 = vpop.permute.xlu0 %481
      %483 = vrot.lane.b32.xlu0 %v164, 110
      %v484 = vpop.permute.xlu0 %483
      %485 = vrot.lane.b32.xlu0 %v166, 110
      %v486 = vpop.permute.xlu0 %485
      %vm487 = vcmask 900096
      %v488 = vsel %vm487, %v480, %v482
      %v489 = vsel %vm487, %v482, %v484
      %v490 = vsel %vm487, %v484, %v486
      %v492 = vsel %vm179, %v478, 0
      %v495 = vsel %vm183, %v488, 0
      %v498 = vsel %vm183, %v489, 0
      %v501 = vsel %vm183, %v490, 0
      %503 = vmatprep.subr.bf16.mxu0 %v498
      %504 = vmatpush1.bf16.msra.mxu0 %v495
      %505 = vmatprep.subr.bf16.mxu0 0
      %506 = vmatpush1.bf16.msra.mxu0 0
      %507 = vmatprep.subr.bf16.mxu0 0
      %508 = vmatpush1.bf16.msra.mxu0 0
      %509 = vmatprep.subr.bf16.mxu0 0
      %510 = vmatpush1.bf16.msra.mxu0 0
      %511 = vmatprep.subr.bf16.mxu0 0
      %512 = vmatpush1.bf16.msra.mxu0 0
      %513 = vmatprep.subr.bf16.mxu0 0
      %514 = vmatpush1.bf16.msra.mxu0 0
      %515 = vmatprep.subr.bf16.mxu0 0
      %516 = vmatpush1.bf16.msra.mxu0 0
      %517 = vmatprep.subr.bf16.mxu0 0
      %518 = vmatpush1.bf16.msra.mxu0 0
      %519 = vmatprep.subr.bf16.mxu0 0
      %520 = vmatpush1.bf16.msra.mxu0 0
      %521 = vmatprep.subr.bf16.mxu0 0
      %522 = vmatpush1.bf16.msra.mxu0 0
      %523 = vmatprep.subr.bf16.mxu0 0
      %524 = vmatpush1.bf16.msra.mxu0 0
      %525 = vmatprep.subr.bf16.mxu0 0
      %526 = vmatpush1.bf16.msra.mxu0 0
      %527 = vmatprep.subr.bf16.mxu0 0
      %528 = vmatpush1.bf16.msra.mxu0 0
      %529 = vmatprep.subr.bf16.mxu0 0
      %530 = vmatpush1.bf16.msra.mxu0 0
      %531 = vmatprep.subr.bf16.mxu0 0
      %532 = vmatpush1.bf16.msra.mxu0 0
      %533 = vmatprep.subr.bf16.mxu0 0
      %534 = vmatpush1.bf16.msra.mxu0 0
      %535 = vmatprep.mubr.bf16.mxu0 0
      %536 = vmatmul.mubr.bf16.gmra.mrb[0].mxu0 %v492
      %v537 = vpop.f32.mrb[0].mxu0
      %v538 = vadd.f32 0.0, %v537
      %v539 = vpop.f32.mrb[0].mxu0
      %v540 = vadd.f32 0.0, %v539
      %v541 = vpop.f32.mrb[0].mxu0
      %v542 = vpop.f32.mrb[0].mxu0
      %543 = vdwg.mxu0
      %544 = vmatprep.subr.bf16.mxu0 0
      %545 = vmatpush1.bf16.msra.mxu0 %v501
      %546 = vmatprep.subr.bf16.mxu0 0
      %547 = vmatpush1.bf16.msra.mxu0 0
      %548 = vmatprep.subr.bf16.mxu0 0
      %549 = vmatpush1.bf16.msra.mxu0 0
      %550 = vmatprep.subr.bf16.mxu0 0
      %551 = vmatpush1.bf16.msra.mxu0 0
      %552 = vmatprep.subr.bf16.mxu0 0
      %553 = vmatpush1.bf16.msra.mxu0 0
      %554 = vmatprep.subr.bf16.mxu0 0
      %555 = vmatpush1.bf16.msra.mxu0 0
      %556 = vmatprep.subr.bf16.mxu0 0
      %557 = vmatpush1.bf16.msra.mxu0 0
      %558 = vmatprep.subr.bf16.mxu0 0
      %559 = vmatpush1.bf16.msra.mxu0 0
      %560 = vmatprep.subr.bf16.mxu0 0
      %561 = vmatpush1.bf16.msra.mxu0 0
      %562 = vmatprep.subr.bf16.mxu0 0
      %563 = vmatpush1.bf16.msra.mxu0 0
      %564 = vmatprep.subr.bf16.mxu0 0
      %565 = vmatpush1.bf16.msra.mxu0 0
      %566 = vmatprep.subr.bf16.mxu0 0
      %567 = vmatpush1.bf16.msra.mxu0 0
      %568 = vmatprep.subr.bf16.mxu0 0
      %569 = vmatpush1.bf16.msra.mxu0 0
      %570 = vmatprep.subr.bf16.mxu0 0
      %571 = vmatpush1.bf16.msra.mxu0 0
      %572 = vmatprep.subr.bf16.mxu0 0
      %573 = vmatpush1.bf16.msra.mxu0 0
      %574 = vmatprep.subr.bf16.mxu0 0
      %575 = vmatpush1.bf16.msra.mxu0 0
      %576 = vmatprep.mubr.bf16.mxu0 0
      %577 = vmatmul.mubr.bf16.gmra.mrb[0].mxu0 %v492
      %v578 = vpop.f32.mrb[0].mxu0
      %v579 = vadd.f32 0.0, %v578
      %v580 = vpop.f32.mrb[0].mxu0
      %v581 = vpop.f32.mrb[0].mxu0
      %v582 = vpop.f32.mrb[0].mxu0
      %583 = vdwg.mxu0
      %v584 = vadd.f32 %v474, %v538
      %v585 = vadd.f32 %v475, %v540
      %v586 = vadd.f32 %v476, %v579
      %s587 = scalar_lea.vmem %s1, 16
      %v588 = vld [vmem:[%s587] sm:$0xf]
      %589 = vrot.lane.b32.xlu0 %v157, 109
      %v590 = vpop.permute.xlu0 %589
      %591 = vrot.lane.b32.xlu0 %v165, 109
      %v592 = vpop.permute.xlu0 %591
      %593 = vrot.lane.b32.xlu0 %v164, 109
      %v594 = vpop.permute.xlu0 %593
      %595 = vrot.lane.b32.xlu0 %v166, 109
      %v596 = vpop.permute.xlu0 %595
      %vm597 = vcmask 891904
      %v598 = vsel %vm597, %v590, %v592
      %v599 = vsel %vm597, %v592, %v594
      %v600 = vsel %vm597, %v594, %v596
      %v602 = vsel %vm179, %v588, 0
      %v605 = vsel %vm183, %v598, 0
      %v608 = vsel %vm183, %v599, 0
      %v611 = vsel %vm183, %v600, 0
      %613 = vmatprep.subr.bf16.mxu0 %v608
      %614 = vmatpush1.bf16.msra.mxu0 %v605
      %615 = vmatprep.subr.bf16.mxu0 0
      %616 = vmatpush1.bf16.msra.mxu0 0
      %617 = vmatprep.subr.bf16.mxu0 0
      %618 = vmatpush1.bf16.msra.mxu0 0
      %619 = vmatprep.subr.bf16.mxu0 0
      %620 = vmatpush1.bf16.msra.mxu0 0
      %621 = vmatprep.subr.bf16.mxu0 0
      %622 = vmatpush1.bf16.msra.mxu0 0
      %623 = vmatprep.subr.bf16.mxu0 0
      %624 = vmatpush1.bf16.msra.mxu0 0
      %625 = vmatprep.subr.bf16.mxu0 0
      %626 = vmatpush1.bf16.msra.mxu0 0
      %627 = vmatprep.subr.bf16.mxu0 0
      %628 = vmatpush1.bf16.msra.mxu0 0
      %629 = vmatprep.subr.bf16.mxu0 0
      %630 = vmatpush1.bf16.msra.mxu0 0
      %631 = vmatprep.subr.bf16.mxu0 0
      %632 = vmatpush1.bf16.msra.mxu0 0
      %633 = vmatprep.subr.bf16.mxu0 0
      %634 = vmatpush1.bf16.msra.mxu0 0
      %635 = vmatprep.subr.bf16.mxu0 0
      %636 = vmatpush1.bf16.msra.mxu0 0
      %637 = vmatprep.subr.bf16.mxu0 0
      %638 = vmatpush1.bf16.msra.mxu0 0
      %639 = vmatprep.subr.bf16.mxu0 0
      %640 = vmatpush1.bf16.msra.mxu0 0
      %641 = vmatprep.subr.bf16.mxu0 0
      %642 = vmatpush1.bf16.msra.mxu0 0
      %643 = vmatprep.subr.bf16.mxu0 0
      %644 = vmatpush1.bf16.msra.mxu0 0
      %645 = vmatprep.mubr.bf16.mxu0 0
      %646 = vmatmul.mubr.bf16.gmra.mrb[0].mxu0 %v602
      %v647 = vpop.f32.mrb[0].mxu0
      %v648 = vadd.f32 0.0, %v647
      %v649 = vpop.f32.mrb[0].mxu0
      %v650 = vadd.f32 0.0, %v649
      %v651 = vpop.f32.mrb[0].mxu0
      %v652 = vpop.f32.mrb[0].mxu0
      %653 = vdwg.mxu0
      %654 = vmatprep.subr.bf16.mxu0 0
      %655 = vmatpush1.bf16.msra.mxu0 %v611
      %656 = vmatprep.subr.bf16.mxu0 0
      %657 = vmatpush1.bf16.msra.mxu0 0
      %658 = vmatprep.subr.bf16.mxu0 0
      %659 = vmatpush1.bf16.msra.mxu0 0
      %660 = vmatprep.subr.bf16.mxu0 0
      %661 = vmatpush1.bf16.msra.mxu0 0
      %662 = vmatprep.subr.bf16.mxu0 0
      %663 = vmatpush1.bf16.msra.mxu0 0
      %664 = vmatprep.subr.bf16.mxu0 0
      %665 = vmatpush1.bf16.msra.mxu0 0
      %666 = vmatprep.subr.bf16.mxu0 0
      %667 = vmatpush1.bf16.msra.mxu0 0
      %668 = vmatprep.subr.bf16.mxu0 0
      %669 = vmatpush1.bf16.msra.mxu0 0
      %670 = vmatprep.subr.bf16.mxu0 0
      %671 = vmatpush1.bf16.msra.mxu0 0
      %672 = vmatprep.subr.bf16.mxu0 0
      %673 = vmatpush1.bf16.msra.mxu0 0
      %674 = vmatprep.subr.bf16.mxu0 0
      %675 = vmatpush1.bf16.msra.mxu0 0
      %676 = vmatprep.subr.bf16.mxu0 0
      %677 = vmatpush1.bf16.msra.mxu0 0
      %678 = vmatprep.subr.bf16.mxu0 0
      %679 = vmatpush1.bf16.msra.mxu0 0
      %680 = vmatprep.subr.bf16.mxu0 0
      %681 = vmatpush1.bf16.msra.mxu0 0
      %682 = vmatprep.subr.bf16.mxu0 0
      %683 = vmatpush1.bf16.msra.mxu0 0
      %684 = vmatprep.subr.bf16.mxu0 0
      %685 = vmatpush1.bf16.msra.mxu0 0
      %686 = vmatprep.mubr.bf16.mxu0 0
      %687 = vmatmul.mubr.bf16.gmra.mrb[0].mxu0 %v602
      %v688 = vpop.f32.mrb[0].mxu0
      %v689 = vadd.f32 0.0, %v688
      %v690 = vpop.f32.mrb[0].mxu0
      %v691 = vpop.f32.mrb[0].mxu0
      %v692 = vpop.f32.mrb[0].mxu0
      %693 = vdwg.mxu0
      %v694 = vadd.f32 %v584, %v648
      %v695 = vadd.f32 %v585, %v650
      %v696 = vadd.f32 %v586, %v689
      %s697 = scalar_lea.vmem %s1, 20
      %v698 = vld [vmem:[%s697] sm:$0xf]
      %699 = vrot.lane.b32.xlu0 %v157, 108
      %v700 = vpop.permute.xlu0 %699
      %701 = vrot.lane.b32.xlu0 %v165, 108
      %v702 = vpop.permute.xlu0 %701
      %703 = vrot.lane.b32.xlu0 %v164, 108
      %v704 = vpop.permute.xlu0 %703
      %705 = vrot.lane.b32.xlu0 %v166, 108
      %v706 = vpop.permute.xlu0 %705
      %vm707 = vcmask 883712
      %v708 = vsel %vm707, %v700, %v702
      %v709 = vsel %vm707, %v702, %v704
      %v710 = vsel %vm707, %v704, %v706
      %v712 = vsel %vm179, %v698, 0
      %v715 = vsel %vm183, %v708, 0
      %v718 = vsel %vm183, %v709, 0
      %v721 = vsel %vm183, %v710, 0
      %723 = vmatprep.subr.bf16.mxu0 %v718
      %724 = vmatpush1.bf16.msra.mxu0 %v715
      %725 = vmatprep.subr.bf16.mxu0 0
      %726 = vmatpush1.bf16.msra.mxu0 0
      %727 = vmatprep.subr.bf16.mxu0 0
      %728 = vmatpush1.bf16.msra.mxu0 0
      %729 = vmatprep.subr.bf16.mxu0 0
      %730 = vmatpush1.bf16.msra.mxu0 0
      %731 = vmatprep.subr.bf16.mxu0 0
      %732 = vmatpush1.bf16.msra.mxu0 0
      %733 = vmatprep.subr.bf16.mxu0 0
      %734 = vmatpush1.bf16.msra.mxu0 0
      %735 = vmatprep.subr.bf16.mxu0 0
      %736 = vmatpush1.bf16.msra.mxu0 0
      %737 = vmatprep.subr.bf16.mxu0 0
      %738 = vmatpush1.bf16.msra.mxu0 0
      %739 = vmatprep.subr.bf16.mxu0 0
      %740 = vmatpush1.bf16.msra.mxu0 0
      %741 = vmatprep.subr.bf16.mxu0 0
      %742 = vmatpush1.bf16.msra.mxu0 0
      %743 = vmatprep.subr.bf16.mxu0 0
      %744 = vmatpush1.bf16.msra.mxu0 0
      %745 = vmatprep.subr.bf16.mxu0 0
      %746 = vmatpush1.bf16.msra.mxu0 0
      %747 = vmatprep.subr.bf16.mxu0 0
      %748 = vmatpush1.bf16.msra.mxu0 0
      %749 = vmatprep.subr.bf16.mxu0 0
      %750 = vmatpush1.bf16.msra.mxu0 0
      %751 = vmatprep.subr.bf16.mxu0 0
      %752 = vmatpush1.bf16.msra.mxu0 0
      %753 = vmatprep.subr.bf16.mxu0 0
      %754 = vmatpush1.bf16.msra.mxu0 0
      %755 = vmatprep.mubr.bf16.mxu0 0
      %756 = vmatmul.mubr.bf16.gmra.mrb[0].mxu0 %v712
      %v757 = vpop.f32.mrb[0].mxu0
      %v758 = vadd.f32 0.0, %v757
      %v759 = vpop.f32.mrb[0].mxu0
      %v760 = vadd.f32 0.0, %v759
      %v761 = vpop.f32.mrb[0].mxu0
      %v762 = vpop.f32.mrb[0].mxu0
      %763 = vdwg.mxu0
      %764 = vmatprep.subr.bf16.mxu0 0
      %765 = vmatpush1.bf16.msra.mxu0 %v721
      %766 = vmatprep.subr.bf16.mxu0 0
      %767 = vmatpush1.bf16.msra.mxu0 0
      %768 = vmatprep.subr.bf16.mxu0 0
      %769 = vmatpush1.bf16.msra.mxu0 0
      %770 = vmatprep.subr.bf16.mxu0 0
      %771 = vmatpush1.bf16.msra.mxu0 0
      %772 = vmatprep.subr.bf16.mxu0 0
      %773 = vmatpush1.bf16.msra.mxu0 0
      %774 = vmatprep.subr.bf16.mxu0 0
      %775 = vmatpush1.bf16.msra.mxu0 0
      %776 = vmatprep.subr.bf16.mxu0 0
      %777 = vmatpush1.bf16.msra.mxu0 0
      %778 = vmatprep.subr.bf16.mxu0 0
      %779 = vmatpush1.bf16.msra.mxu0 0
      %780 = vmatprep.subr.bf16.mxu0 0
      %781 = vmatpush1.bf16.msra.mxu0 0
      %782 = vmatprep.subr.bf16.mxu0 0
      %783 = vmatpush1.bf16.msra.mxu0 0
      %784 = vmatprep.subr.bf16.mxu0 0
      %785 = vmatpush1.bf16.msra.mxu0 0
      %786 = vmatprep.subr.bf16.mxu0 0
      %787 = vmatpush1.bf16.msra.mxu0 0
      %788 = vmatprep.subr.bf16.mxu0 0
      %789 = vmatpush1.bf16.msra.mxu0 0
      %790 = vmatprep.subr.bf16.mxu0 0
      %791 = vmatpush1.bf16.msra.mxu0 0
      %792 = vmatprep.subr.bf16.mxu0 0
      %793 = vmatpush1.bf16.msra.mxu0 0
      %794 = vmatprep.subr.bf16.mxu0 0
      %795 = vmatpush1.bf16.msra.mxu0 0
      %796 = vmatprep.mubr.bf16.mxu0 0
      %797 = vmatmul.mubr.bf16.gmra.mrb[0].mxu0 %v712
      %v798 = vpop.f32.mrb[0].mxu0
      %v799 = vadd.f32 0.0, %v798
      %v800 = vpop.f32.mrb[0].mxu0
      %v801 = vpop.f32.mrb[0].mxu0
      %v802 = vpop.f32.mrb[0].mxu0
      %803 = vdwg.mxu0
      %v804 = vadd.f32 %v694, %v758
      %v805 = vadd.f32 %v695, %v760
      %v806 = vadd.f32 %v696, %v799
      %s807 = scalar_lea.vmem %s1, 24
      %v808 = vld [vmem:[%s807] sm:$0xf]
      %809 = vrot.lane.b32.xlu0 %v157, 92
      %v810 = vpop.permute.xlu0 %809
      %811 = vrot.lane.b32.xlu0 %v165, 92
      %v812 = vpop.permute.xlu0 %811
      %813 = vrot.lane.b32.xlu0 %v164, 92
      %v814 = vpop.permute.xlu0 %813
      %815 = vrot.lane.b32.xlu0 %v166, 92
      %v816 = vpop.permute.xlu0 %815
      %vm817 = vcmask 752640
      %v818 = vsel %vm817, %v810, %v812
      %v819 = vsel %vm817, %v812, %v814
      %v820 = vsel %vm817, %v814, %v816
      %v822 = vsel %vm179, %v808, 0
      %v825 = vsel %vm183, %v818, 0
      %v828 = vsel %vm183, %v819, 0
      %v831 = vsel %vm183, %v820, 0
      %833 = vmatprep.subr.bf16.mxu0 %v828
      %834 = vmatpush1.bf16.msra.mxu0 %v825
      %835 = vmatprep.subr.bf16.mxu0 0
      %836 = vmatpush1.bf16.msra.mxu0 0
      %837 = vmatprep.subr.bf16.mxu0 0
      %838 = vmatpush1.bf16.msra.mxu0 0
      %839 = vmatprep.subr.bf16.mxu0 0
      %840 = vmatpush1.bf16.msra.mxu0 0
      %841 = vmatprep.subr.bf16.mxu0 0
      %842 = vmatpush1.bf16.msra.mxu0 0
      %843 = vmatprep.subr.bf16.mxu0 0
      %844 = vmatpush1.bf16.msra.mxu0 0
      %845 = vmatprep.subr.bf16.mxu0 0
      %846 = vmatpush1.bf16.msra.mxu0 0
      %847 = vmatprep.subr.bf16.mxu0 0
      %848 = vmatpush1.bf16.msra.mxu0 0
      %849 = vmatprep.subr.bf16.mxu0 0
      %850 = vmatpush1.bf16.msra.mxu0 0
      %851 = vmatprep.subr.bf16.mxu0 0
      %852 = vmatpush1.bf16.msra.mxu0 0
      %853 = vmatprep.subr.bf16.mxu0 0
      %854 = vmatpush1.bf16.msra.mxu0 0
      %855 = vmatprep.subr.bf16.mxu0 0
      %856 = vmatpush1.bf16.msra.mxu0 0
      %857 = vmatprep.subr.bf16.mxu0 0
      %858 = vmatpush1.bf16.msra.mxu0 0
      %859 = vmatprep.subr.bf16.mxu0 0
      %860 = vmatpush1.bf16.msra.mxu0 0
      %861 = vmatprep.subr.bf16.mxu0 0
      %862 = vmatpush1.bf16.msra.mxu0 0
      %863 = vmatprep.subr.bf16.mxu0 0
      %864 = vmatpush1.bf16.msra.mxu0 0
      %865 = vmatprep.mubr.bf16.mxu0 0
      %866 = vmatmul.mubr.bf16.gmra.mrb[0].mxu0 %v822
      %v867 = vpop.f32.mrb[0].mxu0
      %v868 = vadd.f32 0.0, %v867
      %v869 = vpop.f32.mrb[0].mxu0
      %v870 = vadd.f32 0.0, %v869
      %v871 = vpop.f32.mrb[0].mxu0
      %v872 = vpop.f32.mrb[0].mxu0
      %873 = vdwg.mxu0
      %874 = vmatprep.subr.bf16.mxu0 0
      %875 = vmatpush1.bf16.msra.mxu0 %v831
      %876 = vmatprep.subr.bf16.mxu0 0
      %877 = vmatpush1.bf16.msra.mxu0 0
      %878 = vmatprep.subr.bf16.mxu0 0
      %879 = vmatpush1.bf16.msra.mxu0 0
      %880 = vmatprep.subr.bf16.mxu0 0
      %881 = vmatpush1.bf16.msra.mxu0 0
      %882 = vmatprep.subr.bf16.mxu0 0
      %883 = vmatpush1.bf16.msra.mxu0 0
      %884 = vmatprep.subr.bf16.mxu0 0
      %885 = vmatpush1.bf16.msra.mxu0 0
      %886 = vmatprep.subr.bf16.mxu0 0
      %887 = vmatpush1.bf16.msra.mxu0 0
      %888 = vmatprep.subr.bf16.mxu0 0
      %889 = vmatpush1.bf16.msra.mxu0 0
      %890 = vmatprep.subr.bf16.mxu0 0
      %891 = vmatpush1.bf16.msra.mxu0 0
      %892 = vmatprep.subr.bf16.mxu0 0
      %893 = vmatpush1.bf16.msra.mxu0 0
      %894 = vmatprep.subr.bf16.mxu0 0
      %895 = vmatpush1.bf16.msra.mxu0 0
      %896 = vmatprep.subr.bf16.mxu0 0
      %897 = vmatpush1.bf16.msra.mxu0 0
      %898 = vmatprep.subr.bf16.mxu0 0
      %899 = vmatpush1.bf16.msra.mxu0 0
      %900 = vmatprep.subr.bf16.mxu0 0
      %901 = vmatpush1.bf16.msra.mxu0 0
      %902 = vmatprep.subr.bf16.mxu0 0
      %903 = vmatpush1.bf16.msra.mxu0 0
      %904 = vmatprep.subr.bf16.mxu0 0
      %905 = vmatpush1.bf16.msra.mxu0 0
      %906 = vmatprep.mubr.bf16.mxu0 0
      %907 = vmatmul.mubr.bf16.gmra.mrb[0].mxu0 %v822
      %v908 = vpop.f32.mrb[0].mxu0
      %v909 = vadd.f32 0.0, %v908
      %v910 = vpop.f32.mrb[0].mxu0
      %v911 = vpop.f32.mrb[0].mxu0
      %v912 = vpop.f32.mrb[0].mxu0
      %913 = vdwg.mxu0
      %v914 = vadd.f32 %v804, %v868
      %v915 = vadd.f32 %v805, %v870
      %v916 = vadd.f32 %v806, %v909
      %s917 = scalar_lea.vmem %s1, 28
      %v918 = vld [vmem:[%s917] sm:$0xf]
      %919 = vrot.lane.b32.xlu0 %v157, 91
      %v920 = vpop.permute.xlu0 %919
      %921 = vrot.lane.b32.xlu0 %v165, 91
      %v922 = vpop.permute.xlu0 %921
      %923 = vrot.lane.b32.xlu0 %v164, 91
      %v924 = vpop.permute.xlu0 %923
      %925 = vrot.lane.b32.xlu0 %v166, 91
      %v926 = vpop.permute.xlu0 %925
      %vm927 = vcmask 744448
      %v928 = vsel %vm927, %v920, %v922
      %v929 = vsel %vm927, %v922, %v924
      %v930 = vsel %vm927, %v924, %v926
      %v932 = vsel %vm179, %v918, 0
      %v935 = vsel %vm183, %v928, 0
      %v938 = vsel %vm183, %v929, 0
      %v941 = vsel %vm183, %v930, 0
      %943 = vmatprep.subr.bf16.mxu0 %v938
      %944 = vmatpush1.bf16.msra.mxu0 %v935
      %945 = vmatprep.subr.bf16.mxu0 0
      %946 = vmatpush1.bf16.msra.mxu0 0
      %947 = vmatprep.subr.bf16.mxu0 0
      %948 = vmatpush1.bf16.msra.mxu0 0
      %949 = vmatprep.subr.bf16.mxu0 0
      %950 = vmatpush1.bf16.msra.mxu0 0
      %951 = vmatprep.subr.bf16.mxu0 0
      %952 = vmatpush1.bf16.msra.mxu0 0
      %953 = vmatprep.subr.bf16.mxu0 0
      %954 = vmatpush1.bf16.msra.mxu0 0
      %955 = vmatprep.subr.bf16.mxu0 0
      %956 = vmatpush1.bf16.msra.mxu0 0
      %957 = vmatprep.subr.bf16.mxu0 0
      %958 = vmatpush1.bf16.msra.mxu0 0
      %959 = vmatprep.subr.bf16.mxu0 0
      %960 = vmatpush1.bf16.msra.mxu0 0
      %961 = vmatprep.subr.bf16.mxu0 0
      %962 = vmatpush1.bf16.msra.mxu0 0
      %963 = vmatprep.subr.bf16.mxu0 0
      %964 = vmatpush1.bf16.msra.mxu0 0
      %965 = vmatprep.subr.bf16.mxu0 0
      %966 = vmatpush1.bf16.msra.mxu0 0
      %967 = vmatprep.subr.bf16.mxu0 0
      %968 = vmatpush1.bf16.msra.mxu0 0
      %969 = vmatprep.subr.bf16.mxu0 0
      %970 = vmatpush1.bf16.msra.mxu0 0
      %971 = vmatprep.subr.bf16.mxu0 0
      %972 = vmatpush1.bf16.msra.mxu0 0
      %973 = vmatprep.subr.bf16.mxu0 0
      %974 = vmatpush1.bf16.msra.mxu0 0
      %975 = vmatprep.mubr.bf16.mxu0 0
      %976 = vmatmul.mubr.bf16.gmra.mrb[0].mxu0 %v932
      %v977 = vpop.f32.mrb[0].mxu0
      %v978 = vadd.f32 0.0, %v977
      %v979 = vpop.f32.mrb[0].mxu0
      %v980 = vadd.f32 0.0, %v979
      %v981 = vpop.f32.mrb[0].mxu0
      %v982 = vpop.f32.mrb[0].mxu0
      %983 = vdwg.mxu0
      %984 = vmatprep.subr.bf16.mxu0 0
      %985 = vmatpush1.bf16.msra.mxu0 %v941
      %986 = vmatprep.subr.bf16.mxu0 0
      %987 = vmatpush1.bf16.msra.mxu0 0
      %988 = vmatprep.subr.bf16.mxu0 0
      %989 = vmatpush1.bf16.msra.mxu0 0
      %990 = vmatprep.subr.bf16.mxu0 0
      %991 = vmatpush1.bf16.msra.mxu0 0
      %992 = vmatprep.subr.bf16.mxu0 0
      %993 = vmatpush1.bf16.msra.mxu0 0
      %994 = vmatprep.subr.bf16.mxu0 0
      %995 = vmatpush1.bf16.msra.mxu0 0
      %996 = vmatprep.subr.bf16.mxu0 0
      %997 = vmatpush1.bf16.msra.mxu0 0
      %998 = vmatprep.subr.bf16.mxu0 0
      %999 = vmatpush1.bf16.msra.mxu0 0
      %1000 = vmatprep.subr.bf16.mxu0 0
      %1001 = vmatpush1.bf16.msra.mxu0 0
      %1002 = vmatprep.subr.bf16.mxu0 0
      %1003 = vmatpush1.bf16.msra.mxu0 0
      %1004 = vmatprep.subr.bf16.mxu0 0
      %1005 = vmatpush1.bf16.msra.mxu0 0
      %1006 = vmatprep.subr.bf16.mxu0 0
      %1007 = vmatpush1.bf16.msra.mxu0 0
      %1008 = vmatprep.subr.bf16.mxu0 0
      %1009 = vmatpush1.bf16.msra.mxu0 0
      %1010 = vmatprep.subr.bf16.mxu0 0
      %1011 = vmatpush1.bf16.msra.mxu0 0
      %1012 = vmatprep.subr.bf16.mxu0 0
      %1013 = vmatpush1.bf16.msra.mxu0 0
      %1014 = vmatprep.subr.bf16.mxu0 0
      %1015 = vmatpush1.bf16.msra.mxu0 0
      %1016 = vmatprep.mubr.bf16.mxu0 0
      %1017 = vmatmul.mubr.bf16.gmra.mrb[0].mxu0 %v932
      %v1018 = vpop.f32.mrb[0].mxu0
      %v1019 = vadd.f32 0.0, %v1018
      %v1020 = vpop.f32.mrb[0].mxu0
      %v1021 = vpop.f32.mrb[0].mxu0
      %v1022 = vpop.f32.mrb[0].mxu0
      %1023 = vdwg.mxu0
      %v1024 = vadd.f32 %v914, %v978
      %v1025 = vadd.f32 %v915, %v980
      %v1026 = vadd.f32 %v916, %v1019
      %s1027 = scalar_lea.vmem %s1, 32
      %v1028 = vld [vmem:[%s1027] sm:$0xf]
      %1029 = vrot.lane.b32.xlu0 %v157, 90
      %v1030 = vpop.permute.xlu0 %1029
      %1031 = vrot.lane.b32.xlu0 %v165, 90
      %v1032 = vpop.permute.xlu0 %1031
      %1033 = vrot.lane.b32.xlu0 %v164, 90
      %v1034 = vpop.permute.xlu0 %1033
      %1035 = vrot.lane.b32.xlu0 %v166, 90
      %v1036 = vpop.permute.xlu0 %1035
      %vm1037 = vcmask 736256
      %v1038 = vsel %vm1037, %v1030, %v1032
      %v1039 = vsel %vm1037, %v1032, %v1034
      %v1040 = vsel %vm1037, %v1034, %v1036
      %v1042 = vsel %vm179, %v1028, 0
      %v1045 = vsel %vm183, %v1038, 0
      %v1048 = vsel %vm183, %v1039, 0
      %v1051 = vsel %vm183, %v1040, 0
      %1053 = vmatprep.subr.bf16.mxu0 %v1048
      %1054 = vmatpush1.bf16.msra.mxu0 %v1045
      %1055 = vmatprep.subr.bf16.mxu0 0
      %1056 = vmatpush1.bf16.msra.mxu0 0
      %1057 = vmatprep.subr.bf16.mxu0 0
      %1058 = vmatpush1.bf16.msra.mxu0 0
      %1059 = vmatprep.subr.bf16.mxu0 0
      %1060 = vmatpush1.bf16.msra.mxu0 0
      %1061 = vmatprep.subr.bf16.mxu0 0
      %1062 = vmatpush1.bf16.msra.mxu0 0
      %1063 = vmatprep.subr.bf16.mxu0 0
      %1064 = vmatpush1.bf16.msra.mxu0 0
      %1065 = vmatprep.subr.bf16.mxu0 0
      %1066 = vmatpush1.bf16.msra.mxu0 0
      %1067 = vmatprep.subr.bf16.mxu0 0
      %1068 = vmatpush1.bf16.msra.mxu0 0
      %1069 = vmatprep.subr.bf16.mxu0 0
      %1070 = vmatpush1.bf16.msra.mxu0 0
      %1071 = vmatprep.subr.bf16.mxu0 0
      %1072 = vmatpush1.bf16.msra.mxu0 0
      %1073 = vmatprep.subr.bf16.mxu0 0
      %1074 = vmatpush1.bf16.msra.mxu0 0
      %1075 = vmatprep.subr.bf16.mxu0 0
      %1076 = vmatpush1.bf16.msra.mxu0 0
      %1077 = vmatprep.subr.bf16.mxu0 0
      %1078 = vmatpush1.bf16.msra.mxu0 0
      %1079 = vmatprep.subr.bf16.mxu0 0
      %1080 = vmatpush1.bf16.msra.mxu0 0
      %1081 = vmatprep.subr.bf16.mxu0 0
      %1082 = vmatpush1.bf16.msra.mxu0 0
      %1083 = vmatprep.subr.bf16.mxu0 0
      %1084 = vmatpush1.bf16.msra.mxu0 0
      %1085 = vmatprep.mubr.bf16.mxu0 0
      %1086 = vmatmul.mubr.bf16.gmra.mrb[0].mxu0 %v1042
      %v1087 = vpop.f32.mrb[0].mxu0
      %v1088 = vadd.f32 0.0, %v1087
      %v1089 = vpop.f32.mrb[0].mxu0
      %v1090 = vadd.f32 0.0, %v1089
      %v1091 = vpop.f32.mrb[0].mxu0
      %v1092 = vpop.f32.mrb[0].mxu0
      %1093 = vdwg.mxu0
      %1094 = vmatprep.subr.bf16.mxu0 0
      %1095 = vmatpush1.bf16.msra.mxu0 %v1051
      %1096 = vmatprep.subr.bf16.mxu0 0
      %1097 = vmatpush1.bf16.msra.mxu0 0
      %1098 = vmatprep.subr.bf16.mxu0 0
      %1099 = vmatpush1.bf16.msra.mxu0 0
      %1100 = vmatprep.subr.bf16.mxu0 0
      %1101 = vmatpush1.bf16.msra.mxu0 0
      %1102 = vmatprep.subr.bf16.mxu0 0
      %1103 = vmatpush1.bf16.msra.mxu0 0
      %1104 = vmatprep.subr.bf16.mxu0 0
      %1105 = vmatpush1.bf16.msra.mxu0 0
      %1106 = vmatprep.subr.bf16.mxu0 0
      %1107 = vmatpush1.bf16.msra.mxu0 0
      %1108 = vmatprep.subr.bf16.mxu0 0
      %1109 = vmatpush1.bf16.msra.mxu0 0
      %1110 = vmatprep.subr.bf16.mxu0 0
      %1111 = vmatpush1.bf16.msra.mxu0 0
      %1112 = vmatprep.subr.bf16.mxu0 0
      %1113 = vmatpush1.bf16.msra.mxu0 0
      %1114 = vmatprep.subr.bf16.mxu0 0
      %1115 = vmatpush1.bf16.msra.mxu0 0
      %1116 = vmatprep.subr.bf16.mxu0 0
      %1117 = vmatpush1.bf16.msra.mxu0 0
      %1118 = vmatprep.subr.bf16.mxu0 0
      %1119 = vmatpush1.bf16.msra.mxu0 0
      %1120 = vmatprep.subr.bf16.mxu0 0
      %1121 = vmatpush1.bf16.msra.mxu0 0
      %1122 = vmatprep.subr.bf16.mxu0 0
      %1123 = vmatpush1.bf16.msra.mxu0 0
      %1124 = vmatprep.subr.bf16.mxu0 0
      %1125 = vmatpush1.bf16.msra.mxu0 0
      %1126 = vmatprep.mubr.bf16.mxu0 0
      %1127 = vmatmul.mubr.bf16.gmra.mrb[0].mxu0 %v1042
      %v1128 = vpop.f32.mrb[0].mxu0
      %v1129 = vadd.f32 0.0, %v1128
      %v1130 = vpop.f32.mrb[0].mxu0
      %v1131 = vpop.f32.mrb[0].mxu0
      %v1132 = vpop.f32.mrb[0].mxu0
      %1133 = vdwg.mxu0
      %v1134 = vadd.f32 %v1024, %v1088
      %v1135 = vadd.f32 %v1025, %v1090
      %v1136 = vadd.f32 %v1026, %v1129
      %1137 = vst [vmem:[%s143] sm:$0xff] %v1134
      %1138 = vst [vmem:[%s143 + $0x8] sm:$0xff] %v1135
      %1139 = vst [vmem:[%s143 + $0x10] sm:$0xff] %v1136
      %p1140 = scmp.lt.s32.totalorder %s13, 1
      %s1141 = scalar_select %p1140, %s13, 1
      %s1142 = smul.addr %s1141, 3
      %s1143 = smul.addr %s1142, 8
      %s1144 = scalar_lea.vmem %s2, %s1143
      // Predicated region
      $region29: #{my_conv2d.1} parent=27 // pred_check
        %p1145 = pneg %p78
      $region30: #{my_conv2d.1} parent=27 // pred_check_branch
        %1147 = sbr.rel (%p1145) target = $region32
      $region31: #{my_conv2d.1} parent=27 // pred_region
        _
      $region32: #{my_conv2d.1} parent=27 // pred_fallthru
        _
    $region28: #{my_conv2d.1} parent=5 // pred_fallthru
      _
    %p1148 = scmp.le.s32.totalorder 2, %s8
    // Predicated region
    $region33: #{my_conv2d.1} parent=5 // pred_check
      %p1149 = pneg %p1148
    $region34: #{my_conv2d.1} parent=5 // pred_check_branch
      %1151 = sbr.rel (%p1149) target = $region36
    $region35: #{my_conv2d.1} parent=5 // pred_region
      %s1152 = ssub.s32 %s8, 2
      // Predicated region
      $region37: #{my_conv2d.1} parent=35 // pred_check
        %p1153 = pneg %p84
      $region38: #{my_conv2d.1} parent=35 // pred_check_branch
        %1155 = sbr.rel (%p1153) target = $region40
      $region39: #{my_conv2d.1} parent=35 // pred_region
        %p1156 = scmp.lt.s32.totalorder %s14, 1
        %s1157 = scalar_select %p1156, %s14, 1
        %s1158 = smul.addr %s1157, 3
        %s1159 = smul.addr %s1158, 8
        %s1160 = scalar_lea.vmem %s2, %s1159
      $region40: #{my_conv2d.1} parent=35 // pred_fallthru
        _
    $region36: #{my_conv2d.1} parent=5 // pred_fallthru
      _
  $region6: #{my_conv2d.1} parent=0 // loop_footer
    %s12 = sadd.s32 1, %s8
  $region7: #{my_conv2d.1} parent=0 // loop_footer_branch
    %7 = sbr.rel target = $region3
  $region8: #{my_conv2d.1} parent=0 // loop_exit
    _

</llo_original>
